<compile_context>
chip_gen: v7x
topology: tpu7x:2x2x1
jax: 0.10.0
libtpu: 0.0.40
codegen_flags: <defaults>
</compile_context>

<pallas_src>
import functools
import math

import jax
import jax.numpy as jnp
from jax.experimental import pallas as pl
from jax.experimental.pallas import tpu as pltpu


# ----------------------------- config ---------------------------------------
class Cfg:
    pc_decoder_init_stddev = 0.05   # unused by forward (kept for parity)
    fc_dim = 32
    pc_num_points = 8
    pc_unit_cube = True
    pc_rgb = True
    pc_rgb_deep_decoder = True


# ----------------------------- helpers ---------------------------------------
def _round_up(x, m):
    return ((x + m - 1) // m) * m


def _xavier_uniform(key, fan_out, fan_in):
    limit = math.sqrt(6.0 / (fan_in + fan_out))
    return jax.random.uniform(key, (fan_out, fan_in), jnp.float32, -limit, limit)


def init_decoder_params(key, cfg):
    """Weights in PyTorch nn.Linear layout [out, in]; biases as [out]."""
    d = cfg.fc_dim
    n3 = cfg.pc_num_points * 3
    ks = jax.random.split(key, 5)
    return {
        # pts_raw_fc: Linear(fc_dim, num_points*3)
        "w_pts": _xavier_uniform(ks[0], n3, d),
        "b_pts": jnp.full((n3,), 0.01, jnp.float32),
        # rgb_deep_decoder: 3x Linear(fc_dim, fc_dim) (+ LeakyReLU in kernel)
        "w1": _xavier_uniform(ks[1], d, d),
        "b1": jnp.full((d,), 0.01, jnp.float32),
        "w2": _xavier_uniform(ks[2], d, d),
        "b2": jnp.full((d,), 0.01, jnp.float32),
        "w3": _xavier_uniform(ks[3], d, d),
        "b3": jnp.full((d,), 0.01, jnp.float32),
        # rgb_raw_dec: Linear(fc_dim, num_points*3)
        "w_rgb": _xavier_uniform(ks[4], n3, d),
        "b_rgb": jnp.full((n3,), 0.01, jnp.float32),
    }


def _leaky_relu(x, slope=0.01):
    # nn.LeakyReLU() default negative_slope = 0.01
    return jnp.where(x >= 0, x, slope * x)


def _xyz_act(raw, unit_cube):
    p = jnp.tanh(raw)
    return p * 0.5 if unit_cube else p


# ----------------------------- Pallas kernels --------------------------------
# Natural layout:
#   activations  [tb, D]      (batch tile on sublanes, D=32 lanes)
#   weights      [D_in, D_out] (pre-transposed, VMEM-resident across steps)
#   biases       [1, D_out]
#   output       [tb, out_rows]

def _kernel_deep(unit_cube, n3, mm_dtype,
                 x_ref, conv_ref,
                 wp_ref, bp_ref,
                 w1_ref, b1_ref, w2_ref, b2_ref, w3_ref, b3_ref,
                 wr_ref, br_ref,
                 out_ref):
    # xyz branch: Linear -> tanh (-> /2 if unit cube)
    x = x_ref[...].astype(mm_dtype)                               # [tb, D]
    pts = jnp.dot(x, wp_ref[...],
                  preferred_element_type=jnp.float32) + bp_ref[...]
    out_ref[:, :n3] = _xyz_act(pts, unit_cube).astype(out_ref.dtype)

    # rgb branch: 3x (Linear -> LeakyReLU) on conv_features, Linear -> sigmoid
    h = conv_ref[...].astype(mm_dtype)
    h = _leaky_relu(jnp.dot(h, w1_ref[...],
                            preferred_element_type=jnp.float32) + b1_ref[...])
    h = _leaky_relu(jnp.dot(h.astype(mm_dtype), w2_ref[...],
                            preferred_element_type=jnp.float32) + b2_ref[...])
    h = _leaky_relu(jnp.dot(h.astype(mm_dtype), w3_ref[...],
                            preferred_element_type=jnp.float32) + b3_ref[...])
    rgb = jnp.dot(h.astype(mm_dtype), wr_ref[...],
                  preferred_element_type=jnp.float32) + br_ref[...]
    out_ref[:, n3:] = jax.nn.sigmoid(rgb).astype(out_ref.dtype)


def _kernel_fused_out(unit_cube, n3, mm_dtype, x_ref, wf_ref, bf_ref, out_ref):
    # shallow-rgb config: both heads read the same activation ->
    # one fused [D, 2*n3] matmul, split activations afterwards.
    x = x_ref[...].astype(mm_dtype)
    raw = jnp.dot(x, wf_ref[...],
                  preferred_element_type=jnp.float32) + bf_ref[...]
    out_ref[:, :n3] = _xyz_act(raw[:, :n3], unit_cube).astype(out_ref.dtype)
    out_ref[:, n3:] = jax.nn.sigmoid(raw[:, n3:]).astype(out_ref.dtype)


def _kernel_xyz_only(unit_cube, mm_dtype, x_ref, wp_ref, bp_ref, out_ref):
    x = x_ref[...].astype(mm_dtype)
    raw = jnp.dot(x, wp_ref[...],
                  preferred_element_type=jnp.float32) + bp_ref[...]
    out_ref[...] = _xyz_act(raw, unit_cube).astype(out_ref.dtype)


# ----------------------------- wrapper ---------------------------------------
def decoder_forward(cfg, params, inputs, enc_all=None, *,
                    matmul_dtype=jnp.float32, out_dtype=jnp.float32,
                    block_b=8192):
    """Mirrors Decoder.forward(inputs, enc_all).

    matmul_dtype: jnp.float32 (exact) or jnp.bfloat16 (cast done in-kernel,
                  f32 accumulation kept; recommended on v5e when ~5e-2
                  tolerance is acceptable).
    out_dtype:    output activation dtype (bf16 halves writeback bytes).
    block_b:      batch tile rows.  8192 f32 (deep) is ~7 MiB double-buffered,
                  comfortably under every generation's VMEM limit (incl. the
                  v7x 32 MiB scoped default); raise vmem_limit_bytes if you
                  push far beyond ~16384.
    """
    B, D = inputs.shape
    n = cfg.pc_num_points
    n3 = n * 3

    if not cfg.pc_rgb:
        mode = "none"
    elif cfg.pc_rgb_deep_decoder:
        mode = "deep"
    else:
        mode = "shallow"

    # Batch tile: multiple of 8 sublanes, no padding of the array itself;
    # the last grid block may be partial (Pallas masks the writeback).
    tb = min(block_b, max(8, _round_up(B, 8)))
    # Ensure >= 2 grid steps when possible so the "parallel" axis engages both
    # TensorCores on v7x (no-op concern on single-TC v5e/v6e).
    if pl.cdiv(B, tb) == 1 and B > 8:
        tb = max(8, _round_up((B + 1) // 2, 8))
    grid = (pl.cdiv(B, tb),)

    cast_w = lambda w: w.T.astype(matmul_dtype)     # [in, out], tiny arrays
    row_b = lambda b: b.reshape(1, -1)              # [1, out]

    act_spec = pl.BlockSpec((tb, D), lambda i: (i, 0))
    # Constant index_map -> weights/biases stay VMEM-resident across steps.
    resident = lambda a: pl.BlockSpec(a.shape, lambda i: (0, 0))

    if mode == "deep":
        conv = enc_all["conv_features"]
        args = [inputs, conv,
                cast_w(params["w_pts"]), row_b(params["b_pts"]),
                cast_w(params["w1"]), row_b(params["b1"]),
                cast_w(params["w2"]), row_b(params["b2"]),
                cast_w(params["w3"]), row_b(params["b3"]),
                cast_w(params["w_rgb"]), row_b(params["b_rgb"])]
        in_specs = [act_spec, act_spec] + [resident(a) for a in args[2:]]
        kernel = functools.partial(_kernel_deep, cfg.pc_unit_cube, n3,
                                   matmul_dtype)
        out_rows = 2 * n3
        flops_row = 2 * D * (2 * n3) + 2 * 3 * D * D
        trans_row = 2 * n3
    elif mode == "shallow":
        # Fuse the two 32->24 heads into a single 32->48 matmul.
        w_f = jnp.concatenate([cast_w(params["w_pts"]),
                               cast_w(params["w_rgb"])], axis=1)
        b_f = jnp.concatenate([row_b(params["b_pts"]),
                               row_b(params["b_rgb"])], axis=1)
        args = [inputs, w_f, b_f]
        in_specs = [act_spec, resident(w_f), resident(b_f)]
        kernel = functools.partial(_kernel_fused_out, cfg.pc_unit_cube, n3,
                                   matmul_dtype)
        out_rows = 2 * n3
        flops_row = 2 * D * (2 * n3)
        trans_row = 2 * n3
    else:  # xyz only: rgb branch skipped entirely, no conv_features needed.
        args = [inputs, cast_w(params["w_pts"]), row_b(params["b_pts"])]
        in_specs = [act_spec, resident(args[1]), resident(args[2])]
        kernel = functools.partial(_kernel_xyz_only, cfg.pc_unit_cube,
                                   matmul_dtype)
        out_rows = n3
        flops_row = 2 * D * n3
        trans_row = n3

    out_spec = pl.BlockSpec((tb, out_rows), lambda i: (i, 0))

    bytes_accessed = (sum(int(a.size) * a.dtype.itemsize for a in args)
                      + B * out_rows * jnp.dtype(out_dtype).itemsize)
    cost = pl.CostEstimate(flops=flops_row * B,
                           transcendentals=trans_row * B,
                           bytes_accessed=bytes_accessed)

    out = pl.pallas_call(
        kernel,
        grid=grid,
        in_specs=in_specs,
        out_specs=out_spec,
        out_shape=jax.ShapeDtypeStruct((B, out_rows), out_dtype),
        compiler_params=pltpu.CompilerParams(
            # Batch tiles are independent: shard across v7x's two TensorCores.
            dimension_semantics=("parallel",)),
        cost_estimate=cost,
    )(*args)

    result = {"xyz": out[:, :n3].reshape(B, n, 3)}
    result["rgb"] = out[:, n3:].reshape(B, n, 3) if cfg.pc_rgb else None
    return result


# ----------------------------- reference (pure JAX) ---------------------------
def decoder_forward_ref(cfg, params, inputs, enc_all=None):
    def lin(x, w, b):
        return x @ w.T + b
    pred_pts = jnp.tanh(lin(inputs, params["w_pts"], params["b_pts"]))
    pred_pts = pred_pts.reshape(inputs.shape[0], cfg.pc_num_points, 3)
    if cfg.pc_unit_cube:
        pred_pts = pred_pts / 2.0
    if cfg.pc_rgb:
        if cfg.pc_rgb_deep_decoder:
            h = enc_all["conv_features"]
            h = _leaky_relu(lin(h, params["w1"], params["b1"]))
            h = _leaky_relu(lin(h, params["w2"], params["b2"]))
            h = _leaky_relu(lin(h, params["w3"], params["b3"]))
        else:
            h = inputs
        rgb = jax.nn.sigmoid(lin(h, params["w_rgb"], params["b_rgb"]))
        rgb = rgb.reshape(inputs.shape[0], cfg.pc_num_points, 3)
    else:
        rgb = None
    return {"xyz": pred_pts, "rgb": rgb}


# ----------------------------- main ------------------------------------------
if __name__ == "__main__":
    cfg = Cfg()
    key = jax.random.PRNGKey(0)
    k_param, k_inp, k_conv = jax.random.split(key, 3)

    B = 2
    params = init_decoder_params(k_param, cfg)
    inputs = jax.random.normal(k_inp, (B, cfg.fc_dim), jnp.float32)
    enc_all = {"conv_features": jax.random.normal(k_conv, (B, cfg.fc_dim),
                                                  jnp.float32)}

    # --- deep-rgb config (default), f32 matmuls ---
    out = decoder_forward(cfg, params, inputs, enc_all)
    jax.block_until_ready(out["xyz"])
    jax.block_until_ready(out["rgb"])
    ref = decoder_forward_ref(cfg, params, inputs, enc_all)
    assert out["xyz"].shape == (B, cfg.pc_num_points, 3)
    assert out["rgb"].shape == (B, cfg.pc_num_points, 3)
    assert jnp.allclose(out["xyz"], ref["xyz"], atol=1e-4)
    assert jnp.allclose(out["rgb"], ref["rgb"], atol=1e-4)

    # --- bf16 matmul + bf16 output (DMA/writeback-byte saving path) ---
    out_bf = decoder_forward(cfg, params, inputs, enc_all,
                             matmul_dtype=jnp.bfloat16,
                             out_dtype=jnp.bfloat16)
    jax.block_until_ready(out_bf["xyz"])
    assert jnp.allclose(out_bf["xyz"].astype(jnp.float32), ref["xyz"], atol=5e-2)
    assert jnp.allclose(out_bf["rgb"].astype(jnp.float32), ref["rgb"], atol=5e-2)

    # --- shallow-rgb specialization (single fused [32, 48] matmul) ---
    cfg_sh = Cfg()
    cfg_sh.pc_rgb_deep_decoder = False
    out_sh = decoder_forward(cfg_sh, params, inputs, enc_all)
    jax.block_until_ready(out_sh["xyz"])
    ref_sh = decoder_forward_ref(cfg_sh, params, inputs, enc_all)
    assert jnp.allclose(out_sh["xyz"], ref_sh["xyz"], atol=1e-4)
    assert jnp.allclose(out_sh["rgb"], ref_sh["rgb"], atol=1e-4)

    # --- xyz-only specialization (rgb branch skipped, no conv_features) ---
    cfg_xyz = Cfg()
    cfg_xyz.pc_rgb = False
    out_xyz = decoder_forward(cfg_xyz, params, inputs, {})
    jax.block_until_ready(out_xyz["xyz"])
    ref_xyz = decoder_forward_ref(cfg_xyz, params, inputs, {})
    assert out_xyz["rgb"] is None
    assert jnp.allclose(out_xyz["xyz"], ref_xyz["xyz"], atol=1e-4)

    # --- larger batch: multi-step grid + partial (masked) last block ---
    Bl = 300
    k_inp2, k_conv2 = jax.random.split(jax.random.PRNGKey(1))
    inputs_l = jax.random.normal(k_inp2, (Bl, cfg.fc_dim), jnp.float32)
    enc_l = {"conv_features": jax.random.normal(k_conv2, (Bl, cfg.fc_dim),
                                                jnp.float32)}
    out_l = decoder_forward(cfg, params, inputs_l, enc_l, block_b=128)
    jax.block_until_ready(out_l["xyz"])
    ref_l = decoder_forward_ref(cfg, params, inputs_l, enc_l)
    assert jnp.allclose(out_l["xyz"], ref_l["xyz"], atol=1e-4)
    assert jnp.allclose(out_l["rgb"], ref_l["rgb"], atol=1e-4)

    print("KERNEL_OK")
</pallas_src>

<mosaic_0001>
module attributes {stable_mosaic.version = 11 : i64} {
  func.func @_kernel_deep(%arg0: i32, %arg1: memref<8x32xf32, #tpu.memory_space<vmem>>, %arg2: memref<8x32xf32, #tpu.memory_space<vmem>>, %arg3: memref<32x24xf32, #tpu.memory_space<vmem>>, %arg4: memref<1x24xf32, #tpu.memory_space<vmem>>, %arg5: memref<32x32xf32, #tpu.memory_space<vmem>>, %arg6: memref<1x32xf32, #tpu.memory_space<vmem>>, %arg7: memref<32x32xf32, #tpu.memory_space<vmem>>, %arg8: memref<1x32xf32, #tpu.memory_space<vmem>>, %arg9: memref<32x32xf32, #tpu.memory_space<vmem>>, %arg10: memref<1x32xf32, #tpu.memory_space<vmem>>, %arg11: memref<32x24xf32, #tpu.memory_space<vmem>>, %arg12: memref<1x24xf32, #tpu.memory_space<vmem>>, %arg13: memref<8x48xf32, #tpu.memory_space<vmem>>) attributes {dimension_semantics = [#tpu.dimension_semantics<parallel>], iteration_bounds = array<i64: 1>, scalar_prefetch = 0 : i64, scratch_operands = 0 : i64, tpu.core_type = #tpu.core_type<tc>, window_params = [{transform_indices = @transform_0, window_bounds = array<i64: 8, 32>}, {transform_indices = @transform_1, window_bounds = array<i64: 8, 32>}, {pipeline_mode = #tpu.pipeline_mode<synchronous>, transform_indices = @transform_2, window_bounds = array<i64: 32, 24>}, {pipeline_mode = #tpu.pipeline_mode<synchronous>, transform_indices = @transform_3, window_bounds = array<i64: 1, 24>}, {pipeline_mode = #tpu.pipeline_mode<synchronous>, transform_indices = @transform_4, window_bounds = array<i64: 32, 32>}, {pipeline_mode = #tpu.pipeline_mode<synchronous>, transform_indices = @transform_5, window_bounds = array<i64: 1, 32>}, {pipeline_mode = #tpu.pipeline_mode<synchronous>, transform_indices = @transform_6, window_bounds = array<i64: 32, 32>}, {pipeline_mode = #tpu.pipeline_mode<synchronous>, transform_indices = @transform_7, window_bounds = array<i64: 1, 32>}, {pipeline_mode = #tpu.pipeline_mode<synchronous>, transform_indices = @transform_8, window_bounds = array<i64: 32, 32>}, {pipeline_mode = #tpu.pipeline_mode<synchronous>, transform_indices = @transform_9, window_bounds = array<i64: 1, 32>}, {pipeline_mode = #tpu.pipeline_mode<synchronous>, transform_indices = @transform_10, window_bounds = array<i64: 32, 24>}, {pipeline_mode = #tpu.pipeline_mode<synchronous>, transform_indices = @transform_11, window_bounds = array<i64: 1, 24>}, {transform_indices = @transform_12, window_bounds = array<i64: 8, 48>}]} {
    %c0 = arith.constant 0 : index
    %c0_0 = arith.constant 0 : index
    %0 = vector.load %arg1[%c0, %c0_0] : memref<8x32xf32, #tpu.memory_space<vmem>>, vector<8x32xf32>
    %c0_1 = arith.constant 0 : index
    %c0_2 = arith.constant 0 : index
    %1 = vector.load %arg3[%c0_1, %c0_2] : memref<32x24xf32, #tpu.memory_space<vmem>>, vector<32x24xf32>
    %cst = arith.constant dense<0.000000e+00> : vector<8x24xf32>
    %2 = tpu.matmul %0, %1, %cst {dimension_numbers = #tpu.dot_dimension_numbers<[1], [0], [0], [1], [0, 0, 1, 1], [], []>} : vector<8x32xf32>, vector<32x24xf32>, vector<8x24xf32> -> vector<8x24xf32>
    %c0_3 = arith.constant 0 : index
    %c0_4 = arith.constant 0 : index
    %3 = vector.load %arg4[%c0_3, %c0_4] : memref<1x24xf32, #tpu.memory_space<vmem>>, vector<1x24xf32>
    %4 = vector.broadcast %3 : vector<1x24xf32> to vector<8x24xf32>
    %5 = arith.addf %2, %4 : vector<8x24xf32>
    %6 = math.tanh %5 : vector<8x24xf32>
    %cst_5 = arith.constant 5.000000e-01 : f32
    %7 = vector.broadcast %cst_5 : f32 to vector<8x24xf32>
    %8 = arith.mulf %6, %7 : vector<8x24xf32>
    %c0_6 = arith.constant 0 : index
    %c0_7 = arith.constant 0 : index
    %9 = vector.load %arg13[%c0_6, %c0_7] : memref<8x48xf32, #tpu.memory_space<vmem>>, vector<8x24xf32>
    tpu.vector_store %arg13[%c0_6, %c0_7], %8 {strides = array<i32>} : memref<8x48xf32, #tpu.memory_space<vmem>>, vector<8x24xf32>,
    %c0_8 = arith.constant 0 : index
    %c0_9 = arith.constant 0 : index
    %10 = vector.load %arg2[%c0_8, %c0_9] : memref<8x32xf32, #tpu.memory_space<vmem>>, vector<8x32xf32>
    %c0_10 = arith.constant 0 : index
    %c0_11 = arith.constant 0 : index
    %11 = vector.load %arg5[%c0_10, %c0_11] : memref<32x32xf32, #tpu.memory_space<vmem>>, vector<32x32xf32>
    %cst_12 = arith.constant dense<0.000000e+00> : vector<8x32xf32>
    %12 = tpu.matmul %10, %11, %cst_12 {dimension_numbers = #tpu.dot_dimension_numbers<[1], [0], [0], [1], [0, 0, 1, 1], [], []>} : vector<8x32xf32>, vector<32x32xf32>, vector<8x32xf32> -> vector<8x32xf32>
    %c0_13 = arith.constant 0 : index
    %c0_14 = arith.constant 0 : index
    %13 = vector.load %arg6[%c0_13, %c0_14] : memref<1x32xf32, #tpu.memory_space<vmem>>, vector<1x32xf32>
    %14 = vector.broadcast %13 : vector<1x32xf32> to vector<8x32xf32>
    %15 = arith.addf %12, %14 : vector<8x32xf32>
    %cst_15 = arith.constant 0.000000e+00 : f32
    %16 = vector.broadcast %cst_15 : f32 to vector<8x32xf32>
    %17 = arith.cmpf oge, %15, %16 : vector<8x32xf32>
    %cst_16 = arith.constant 0.00999999977 : f32
    %18 = vector.broadcast %cst_16 : f32 to vector<8x32xf32>
    %19 = arith.mulf %18, %15 : vector<8x32xf32>
    %20 = arith.select %17, %15, %19 : vector<8x32xi1>, vector<8x32xf32>
    %c0_17 = arith.constant 0 : index
    %c0_18 = arith.constant 0 : index
    %21 = vector.load %arg7[%c0_17, %c0_18] : memref<32x32xf32, #tpu.memory_space<vmem>>, vector<32x32xf32>
    %cst_19 = arith.constant dense<0.000000e+00> : vector<8x32xf32>
    %22 = tpu.matmul %20, %21, %cst_19 {dimension_numbers = #tpu.dot_dimension_numbers<[1], [0], [0], [1], [0, 0, 1, 1], [], []>} : vector<8x32xf32>, vector<32x32xf32>, vector<8x32xf32> -> vector<8x32xf32>
    %c0_20 = arith.constant 0 : index
    %c0_21 = arith.constant 0 : index
    %23 = vector.load %arg8[%c0_20, %c0_21] : memref<1x32xf32, #tpu.memory_space<vmem>>, vector<1x32xf32>
    %24 = vector.broadcast %23 : vector<1x32xf32> to vector<8x32xf32>
    %25 = arith.addf %22, %24 : vector<8x32xf32>
    %cst_22 = arith.constant 0.000000e+00 : f32
    %26 = vector.broadcast %cst_22 : f32 to vector<8x32xf32>
    %27 = arith.cmpf oge, %25, %26 : vector<8x32xf32>
    %cst_23 = arith.constant 0.00999999977 : f32
    %28 = vector.broadcast %cst_23 : f32 to vector<8x32xf32>
    %29 = arith.mulf %28, %25 : vector<8x32xf32>
    %30 = arith.select %27, %25, %29 : vector<8x32xi1>, vector<8x32xf32>
    %c0_24 = arith.constant 0 : index
    %c0_25 = arith.constant 0 : index
    %31 = vector.load %arg9[%c0_24, %c0_25] : memref<32x32xf32, #tpu.memory_space<vmem>>, vector<32x32xf32>
    %cst_26 = arith.constant dense<0.000000e+00> : vector<8x32xf32>
    %32 = tpu.matmul %30, %31, %cst_26 {dimension_numbers = #tpu.dot_dimension_numbers<[1], [0], [0], [1], [0, 0, 1, 1], [], []>} : vector<8x32xf32>, vector<32x32xf32>, vector<8x32xf32> -> vector<8x32xf32>
    %c0_27 = arith.constant 0 : index
    %c0_28 = arith.constant 0 : index
    %33 = vector.load %arg10[%c0_27, %c0_28] : memref<1x32xf32, #tpu.memory_space<vmem>>, vector<1x32xf32>
    %34 = vector.broadcast %33 : vector<1x32xf32> to vector<8x32xf32>
    %35 = arith.addf %32, %34 : vector<8x32xf32>
    %cst_29 = arith.constant 0.000000e+00 : f32
    %36 = vector.broadcast %cst_29 : f32 to vector<8x32xf32>
    %37 = arith.cmpf oge, %35, %36 : vector<8x32xf32>
    %cst_30 = arith.constant 0.00999999977 : f32
    %38 = vector.broadcast %cst_30 : f32 to vector<8x32xf32>
    %39 = arith.mulf %38, %35 : vector<8x32xf32>
    %40 = arith.select %37, %35, %39 : vector<8x32xi1>, vector<8x32xf32>
    %c0_31 = arith.constant 0 : index
    %c0_32 = arith.constant 0 : index
    %41 = vector.load %arg11[%c0_31, %c0_32] : memref<32x24xf32, #tpu.memory_space<vmem>>, vector<32x24xf32>
    %cst_33 = arith.constant dense<0.000000e+00> : vector<8x24xf32>
    %42 = tpu.matmul %40, %41, %cst_33 {dimension_numbers = #tpu.dot_dimension_numbers<[1], [0], [0], [1], [0, 0, 1, 1], [], []>} : vector<8x32xf32>, vector<32x24xf32>, vector<8x24xf32> -> vector<8x24xf32>
    %c0_34 = arith.constant 0 : index
    %c0_35 = arith.constant 0 : index
    %43 = vector.load %arg12[%c0_34, %c0_35] : memref<1x24xf32, #tpu.memory_space<vmem>>, vector<1x24xf32>
    %44 = vector.broadcast %43 : vector<1x24xf32> to vector<8x24xf32>
    %45 = arith.addf %42, %44 : vector<8x24xf32>
    %46 = arith.negf %45 : vector<8x24xf32>
    %47 = math.exp %46 : vector<8x24xf32>
    %cst_36 = arith.constant 1.000000e+00 : f32
    %48 = vector.broadcast %cst_36 : f32 to vector<8x24xf32>
    %49 = arith.addf %48, %47 : vector<8x24xf32>
    %50 = arith.divf %48, %49 : vector<8x24xf32>
    %c0_37 = arith.constant 0 : index
    %c24 = arith.constant 24 : index
    %51 = vector.load %arg13[%c0_37, %c24] : memref<8x48xf32, #tpu.memory_space<vmem>>, vector<8x24xf32>
    tpu.vector_store %arg13[%c0_37, %c24], %50 {strides = array<i32>} : memref<8x48xf32, #tpu.memory_space<vmem>>, vector<8x24xf32>,
    return
  }
  func.func @transform_0(%arg0: i32) -> (i32, i32) {
    %c0_i32 = arith.constant 0 : i32
    %c0_i32_0 = arith.constant 0 : i32
    return %arg0, %c0_i32 : i32, i32
  }
  func.func @transform_1(%arg0: i32) -> (i32, i32) {
    %c0_i32 = arith.constant 0 : i32
    %c0_i32_0 = arith.constant 0 : i32
    return %arg0, %c0_i32 : i32, i32
  }
  func.func @transform_2(%arg0: i32) -> (i32, i32) {
    %c0_i32 = arith.constant 0 : i32
    %c0_i32_0 = arith.constant 0 : i32
    %c0_i32_1 = arith.constant 0 : i32
    return %c0_i32, %c0_i32_0 : i32, i32
  }
  func.func @transform_3(%arg0: i32) -> (i32, i32) {
    %c0_i32 = arith.constant 0 : i32
    %c0_i32_0 = arith.constant 0 : i32
    %c0_i32_1 = arith.constant 0 : i32
    return %c0_i32, %c0_i32_0 : i32, i32
  }
  func.func @transform_4(%arg0: i32) -> (i32, i32) {
    %c0_i32 = arith.constant 0 : i32
    %c0_i32_0 = arith.constant 0 : i32
    %c0_i32_1 = arith.constant 0 : i32
    return %c0_i32, %c0_i32_0 : i32, i32
  }
  func.func @transform_5(%arg0: i32) -> (i32, i32) {
    %c0_i32 = arith.constant 0 : i32
    %c0_i32_0 = arith.constant 0 : i32
    %c0_i32_1 = arith.constant 0 : i32
    return %c0_i32, %c0_i32_0 : i32, i32
  }
  func.func @transform_6(%arg0: i32) -> (i32, i32) {
    %c0_i32 = arith.constant 0 : i32
    %c0_i32_0 = arith.constant 0 : i32
    %c0_i32_1 = arith.constant 0 : i32
    return %c0_i32, %c0_i32_0 : i32, i32
  }
  func.func @transform_7(%arg0: i32) -> (i32, i32) {
    %c0_i32 = arith.constant 0 : i32
    %c0_i32_0 = arith.constant 0 : i32
    %c0_i32_1 = arith.constant 0 : i32
    return %c0_i32, %c0_i32_0 : i32, i32
  }
  func.func @transform_8(%arg0: i32) -> (i32, i32) {
    %c0_i32 = arith.constant 0 : i32
    %c0_i32_0 = arith.constant 0 : i32
    %c0_i32_1 = arith.constant 0 : i32
    return %c0_i32, %c0_i32_0 : i32, i32
  }
  func.func @transform_9(%arg0: i32) -> (i32, i32) {
    %c0_i32 = arith.constant 0 : i32
    %c0_i32_0 = arith.constant 0 : i32
    %c0_i32_1 = arith.constant 0 : i32
    return %c0_i32, %c0_i32_0 : i32, i32
  }
  func.func @transform_10(%arg0: i32) -> (i32, i32) {
    %c0_i32 = arith.constant 0 : i32
    %c0_i32_0 = arith.constant 0 : i32
    %c0_i32_1 = arith.constant 0 : i32
    return %c0_i32, %c0_i32_0 : i32, i32
  }
  func.func @transform_11(%arg0: i32) -> (i32, i32) {
    %c0_i32 = arith.constant 0 : i32
    %c0_i32_0 = arith.constant 0 : i32
    %c0_i32_1 = arith.constant 0 : i32
    return %c0_i32, %c0_i32_0 : i32, i32
  }
  func.func @transform_12(%arg0: i32) -> (i32, i32) {
    %c0_i32 = arith.constant 0 : i32
    %c0_i32_0 = arith.constant 0 : i32
    return %arg0, %c0_i32 : i32, i32
  }
}

</mosaic_0001>

<llo_original>
// kernel: tpu_custom_call.1
$region0: #{tpu_custom_call.1}
  #allocation0 [shape = 'u32[]', space=smem, size = 0x4, offset = 0x4, fixed_abs, tag = 'smem constant byte address 0x4 - core index']
  #allocation1 [shape = 'u32[144,128]{1,0:T(1,128)}', space=vmem, size = 0x12000, scoped, tag = 'internal scratch']
  %s0 = inlined_call_operand.vmem [shape: f32[2,32], index: 0, kind: input, shape index: {}]
  %s1 = inlined_call_operand.hbm [shape: f32[2,32], index: 1, kind: input, shape index: {}]
  %s2 = inlined_call_operand.vmem [shape: f32[32,24], index: 2, kind: input, shape index: {}]
  %s3 = inlined_call_operand.vmem [shape: f32[1,24], index: 3, kind: input, shape index: {}]
  %s4 = inlined_call_operand.vmem [shape: f32[32,32], index: 4, kind: input, shape index: {}]
  %s5 = inlined_call_operand.vmem [shape: f32[1,32], index: 5, kind: input, shape index: {}]
  %s6 = inlined_call_operand.vmem [shape: f32[32,32], index: 6, kind: input, shape index: {}]
  %s7 = inlined_call_operand.vmem [shape: f32[1,32], index: 7, kind: input, shape index: {}]
  %s8 = inlined_call_operand.vmem [shape: f32[32,32], index: 8, kind: input, shape index: {}]
  %s9 = inlined_call_operand.vmem [shape: f32[1,32], index: 9, kind: input, shape index: {}]
  %s10 = inlined_call_operand.vmem [shape: f32[32,24], index: 10, kind: input, shape index: {}]
  %s11 = inlined_call_operand.vmem [shape: f32[1,24], index: 11, kind: input, shape index: {}]
  %s12 = inlined_call_operand.hbm [shape: f32[2,48], index: 12, kind: output, shape index: {}]
  %s13 = sld [smem:[#allocation0]]
  $region62: #{tpu_custom_call.1} parent=0
    _
  %s15 = ssub.s32 1, %s13
  %s16 = scalar_select 0, %s15, %s13
  $region1: #{tpu_custom_call.1} parent=0
    #allocation2 [shape = 'u8[4096]{0}', space=vmem, size = 0x1000, scoped, tag = 'input window, operand 1, single buffered']
    #allocation3 [shape = 's32[1]{0}', space=sflag, size = 0x4, scoped, tag = 'scoped memory for tpu_custom_call.1']
    #allocation4 [shape = 's32[1]{0}', space=sflag, size = 0x4, scoped, tag = 'scoped memory for tpu_custom_call.1']
    #allocation5 [shape = 'u8[4096]{0}', space=vmem, size = 0x1000, scoped, tag = 'output window, operand 0, single buffered']
    %17 = vsyncpa [#allocation3], 0
    %18 = vsyncpa [#allocation4], 0
    // Predicated region
    $region2: #{tpu_custom_call.1} parent=1 // pred_check
      _
    $region3: #{tpu_custom_call.1} parent=1 // pred_check_branch
      %20 = sbr.rel (0) target = $region5
    $region4: #{tpu_custom_call.1} parent=1 // pred_region
      _
    $region5: #{tpu_custom_call.1} parent=1 // pred_fallthru
      _
    // Predicated region
    $region6: #{tpu_custom_call.1} parent=1 // pred_check
      _
    $region7: #{tpu_custom_call.1} parent=1 // pred_check_branch
      %22 = sbr.rel (0) target = $region9
    $region8: #{tpu_custom_call.1} parent=1 // pred_region
      %s24 = ssub.s32 128, 32
      %25 = vsyncadd [#allocation3], %s24
      %s26 = sshll.u32 [#allocation2], 4
      %s27 = int_to_ptr.vmem [resolvable:$true] %s26
      %32 = dma.hbm_to_vmem [thread:$0]  %s1, 32, %s27, [#allocation3], 32, 32, 2
    $region9: #{tpu_custom_call.1} parent=1 // pred_fallthru
      _
    // Predicated region
    $region10: #{tpu_custom_call.1} parent=1 // pred_check
      _
    $region11: #{tpu_custom_call.1} parent=1 // pred_check_branch
      %34 = sbr.rel (0) target = $region13
    $region12: #{tpu_custom_call.1} parent=1 // pred_region
      _
    $region13: #{tpu_custom_call.1} parent=1 // pred_fallthru
      _
    // Predicated region
    $region14: #{tpu_custom_call.1} parent=1 // pred_check
      _
    $region15: #{tpu_custom_call.1} parent=1 // pred_check_branch
      %36 = sbr.rel (0) target = $region17
    $region16: #{tpu_custom_call.1} parent=1 // pred_region
      _
    $region17: #{tpu_custom_call.1} parent=1 // pred_fallthru
      _
    // Predicated region
    $region18: #{tpu_custom_call.1} parent=1 // pred_check
      _
    $region19: #{tpu_custom_call.1} parent=1 // pred_check_branch
      %38 = sbr.rel (0) target = $region21
    $region20: #{tpu_custom_call.1} parent=1 // pred_region
      _
    $region21: #{tpu_custom_call.1} parent=1 // pred_fallthru
      _
    // Predicated region
    $region22: #{tpu_custom_call.1} parent=1 // pred_check
      _
    $region23: #{tpu_custom_call.1} parent=1 // pred_check_branch
      %40 = sbr.rel (0) target = $region25
    $region24: #{tpu_custom_call.1} parent=1 // pred_region
      _
    $region25: #{tpu_custom_call.1} parent=1 // pred_fallthru
      _
    // Predicated region
    $region26: #{tpu_custom_call.1} parent=1 // pred_check
      _
    $region27: #{tpu_custom_call.1} parent=1 // pred_check_branch
      %42 = sbr.rel (0) target = $region29
    $region28: #{tpu_custom_call.1} parent=1 // pred_region
      _
    $region29: #{tpu_custom_call.1} parent=1 // pred_fallthru
      _
    // Predicated region
    $region30: #{tpu_custom_call.1} parent=1 // pred_check
      _
    $region31: #{tpu_custom_call.1} parent=1 // pred_check_branch
      %44 = sbr.rel (0) target = $region33
    $region32: #{tpu_custom_call.1} parent=1 // pred_region
      _
    $region33: #{tpu_custom_call.1} parent=1 // pred_fallthru
      _
    // Predicated region
    $region34: #{tpu_custom_call.1} parent=1 // pred_check
      _
    $region35: #{tpu_custom_call.1} parent=1 // pred_check_branch
      %46 = sbr.rel (0) target = $region37
    $region36: #{tpu_custom_call.1} parent=1 // pred_region
      _
    $region37: #{tpu_custom_call.1} parent=1 // pred_fallthru
      _
    // Predicated region
    $region38: #{tpu_custom_call.1} parent=1 // pred_check
      _
    $region39: #{tpu_custom_call.1} parent=1 // pred_check_branch
      %48 = sbr.rel (0) target = $region41
    $region40: #{tpu_custom_call.1} parent=1 // pred_region
      _
    $region41: #{tpu_custom_call.1} parent=1 // pred_fallthru
      _
    // Predicated region
    $region42: #{tpu_custom_call.1} parent=1 // pred_check
      _
    $region43: #{tpu_custom_call.1} parent=1 // pred_check_branch
      %50 = sbr.rel (0) target = $region45
    $region44: #{tpu_custom_call.1} parent=1 // pred_region
      _
    $region45: #{tpu_custom_call.1} parent=1 // pred_fallthru
      _
    // Predicated region
    $region46: #{tpu_custom_call.1} parent=1 // pred_check
      _
    $region47: #{tpu_custom_call.1} parent=1 // pred_check_branch
      %52 = sbr.rel (0) target = $region49
    $region48: #{tpu_custom_call.1} parent=1 // pred_region
      _
    $region49: #{tpu_custom_call.1} parent=1 // pred_fallthru
      _
    // Predicated region
    $region50: #{tpu_custom_call.1} parent=1 // pred_check
      _
    $region51: #{tpu_custom_call.1} parent=1 // pred_check_branch
      %54 = sbr.rel (0) target = $region53
    $region52: #{tpu_custom_call.1} parent=1 // pred_region
      %55 = dma.done [#allocation3], 128
    $region53: #{tpu_custom_call.1} parent=1 // pred_fallthru
      _
    %v56 = vld [vmem:[%s0] sm:$0xff]
    %v57 = vld [vmem:[%s2] sm:$0xff]
    %v58 = vld [vmem:[%s2 + $0x8] sm:$0xff]
    %v59 = vld [vmem:[%s2 + $0x10] sm:$0xff]
    %v60 = vld [vmem:[%s2 + $0x18] sm:$0xff]
    %v61 = vld [vmem:[%s3] sm:$0x1]
    %v63 = vlaneseq
    %v64 = vshrl.u32 %v63, 7
    %v65 = vsub.s32 0, %v64
    %v66 = vrot.slane %v61, %v65
    %vm68 = vcmask 261120
    %v70 = vsel %vm68, %v56, 0
    %72 = vmatprep.subr.mxu0 0.0
    %73 = vmatpush1.msra.mxu0 %v57
    %74 = vmatprep.subr.mxu0 0.0
    %75 = vmatpush1.msra.mxu0 %v58
    %76 = vmatprep.subr.mxu0 0.0
    %77 = vmatpush1.msra.mxu0 %v59
    %78 = vmatprep.subr.mxu0 0.0
    %79 = vmatpush1.msra.mxu0 %v60
    %80 = vmatprep.subr.mxu0 0.0
    %81 = vmatpush1.msra.mxu0 0.0
    %82 = vmatprep.subr.mxu0 0.0
    %83 = vmatpush1.msra.mxu0 0.0
    %84 = vmatprep.subr.mxu0 0.0
    %85 = vmatpush1.msra.mxu0 0.0
    %86 = vmatprep.subr.mxu0 0.0
    %87 = vmatpush1.msra.mxu0 0.0
    %88 = vmatprep.subr.mxu0 0.0
    %89 = vmatpush1.msra.mxu0 0.0
    %90 = vmatprep.subr.mxu0 0.0
    %91 = vmatpush1.msra.mxu0 0.0
    %92 = vmatprep.subr.mxu0 0.0
    %93 = vmatpush1.msra.mxu0 0.0
    %94 = vmatprep.subr.mxu0 0.0
    %95 = vmatpush1.msra.mxu0 0.0
    %96 = vmatprep.subr.mxu0 0.0
    %97 = vmatpush1.msra.mxu0 0.0
    %98 = vmatprep.subr.mxu0 0.0
    %99 = vmatpush1.msra.mxu0 0.0
    %100 = vmatprep.subr.mxu0 0.0
    %101 = vmatpush1.msra.mxu0 0.0
    %102 = vmatprep.subr.mxu0 0.0
    %103 = vmatpush1.msra.mxu0 0.0
    %104 = vmatprep.subr.mxu0 0.0
    %105 = vmatpush1.msra.mxu0 0.0
    %106 = vmatprep.subr.mxu0 0.0
    %107 = vmatpush1.msra.mxu0 0.0
    %108 = vmatprep.subr.mxu0 0.0
    %109 = vmatpush1.msra.mxu0 0.0
    %110 = vmatprep.subr.mxu0 0.0
    %111 = vmatpush1.msra.mxu0 0.0
    %112 = vmatprep.subr.mxu0 0.0
    %113 = vmatpush1.msra.mxu0 0.0
    %114 = vmatprep.subr.mxu0 0.0
    %115 = vmatpush1.msra.mxu0 0.0
    %116 = vmatprep.subr.mxu0 0.0
    %117 = vmatpush1.msra.mxu0 0.0
    %118 = vmatprep.subr.mxu0 0.0
    %119 = vmatpush1.msra.mxu0 0.0
    %120 = vmatprep.subr.mxu0 0.0
    %121 = vmatpush1.msra.mxu0 0.0
    %122 = vmatprep.subr.mxu0 0.0
    %123 = vmatpush1.msra.mxu0 0.0
    %124 = vmatprep.subr.mxu0 0.0
    %125 = vmatpush1.msra.mxu0 0.0
    %126 = vmatprep.subr.mxu0 0.0
    %127 = vmatpush1.msra.mxu0 0.0
    %128 = vmatprep.subr.mxu0 0.0
    %129 = vmatpush1.msra.mxu0 0.0
    %130 = vmatprep.subr.mxu0 0.0
    %131 = vmatpush1.msra.mxu0 0.0
    %132 = vmatprep.subr.mxu0 0.0
    %133 = vmatpush1.msra.mxu0 0.0
    %134 = vmatprep.subr.mxu0 0.0
    %135 = vmatpush1.msra.mxu0 0.0
    %136 = vmatprep.mubr.f32.mxu0 0.0
    %137 = vmatmul.mubr.f32.gmra.mrb[0].mxu0 %v70
    %v138 = vpop.f32.mrb[0].mxu0
    %v139 = vadd.f32 %v66, %v138
    %v140 = vpop.f32.mrb[0].mxu0
    %141 = vdwg.mxu0
    %v142 = vtanh.pop %v139
    %v143 = vmul.f32 %v142, 0.5
    %vm144 = vcmask 195584
    %145 = vst.msk [vmem:[#allocation5] sm:$0xff] %vm144, %v143
    %v146 = vld [vmem:[#allocation2] sm:$0xff]
    %v147 = vld [vmem:[%s4] sm:$0xff]
    %v148 = vld [vmem:[%s4 + $0x8] sm:$0xff]
    %v149 = vld [vmem:[%s4 + $0x10] sm:$0xff]
    %v150 = vld [vmem:[%s4 + $0x18] sm:$0xff]
    %v151 = vld [vmem:[%s5] sm:$0x1]
    %v153 = vlaneseq
    %v154 = vshrl.u32 %v153, 7
    %v155 = vsub.s32 0, %v154
    %v156 = vrot.slane %v151, %v155
    %v159 = vsel %vm68, %v146, 0
    %161 = vmatprep.subr.mxu0 0.0
    %162 = vmatpush1.msra.mxu0 %v147
    %163 = vmatprep.subr.mxu0 0.0
    %164 = vmatpush1.msra.mxu0 %v148
    %165 = vmatprep.subr.mxu0 0.0
    %166 = vmatpush1.msra.mxu0 %v149
    %167 = vmatprep.subr.mxu0 0.0
    %168 = vmatpush1.msra.mxu0 %v150
    %169 = vmatprep.subr.mxu0 0.0
    %170 = vmatpush1.msra.mxu0 0.0
    %171 = vmatprep.subr.mxu0 0.0
    %172 = vmatpush1.msra.mxu0 0.0
    %173 = vmatprep.subr.mxu0 0.0
    %174 = vmatpush1.msra.mxu0 0.0
    %175 = vmatprep.subr.mxu0 0.0
    %176 = vmatpush1.msra.mxu0 0.0
    %177 = vmatprep.subr.mxu0 0.0
    %178 = vmatpush1.msra.mxu0 0.0
    %179 = vmatprep.subr.mxu0 0.0
    %180 = vmatpush1.msra.mxu0 0.0
    %181 = vmatprep.subr.mxu0 0.0
    %182 = vmatpush1.msra.mxu0 0.0
    %183 = vmatprep.subr.mxu0 0.0
    %184 = vmatpush1.msra.mxu0 0.0
    %185 = vmatprep.subr.mxu0 0.0
    %186 = vmatpush1.msra.mxu0 0.0
    %187 = vmatprep.subr.mxu0 0.0
    %188 = vmatpush1.msra.mxu0 0.0
    %189 = vmatprep.subr.mxu0 0.0
    %190 = vmatpush1.msra.mxu0 0.0
    %191 = vmatprep.subr.mxu0 0.0
    %192 = vmatpush1.msra.mxu0 0.0
    %193 = vmatprep.subr.mxu0 0.0
    %194 = vmatpush1.msra.mxu0 0.0
    %195 = vmatprep.subr.mxu0 0.0
    %196 = vmatpush1.msra.mxu0 0.0
    %197 = vmatprep.subr.mxu0 0.0
    %198 = vmatpush1.msra.mxu0 0.0
    %199 = vmatprep.subr.mxu0 0.0
    %200 = vmatpush1.msra.mxu0 0.0
    %201 = vmatprep.subr.mxu0 0.0
    %202 = vmatpush1.msra.mxu0 0.0
    %203 = vmatprep.subr.mxu0 0.0
    %204 = vmatpush1.msra.mxu0 0.0
    %205 = vmatprep.subr.mxu0 0.0
    %206 = vmatpush1.msra.mxu0 0.0
    %207 = vmatprep.subr.mxu0 0.0
    %208 = vmatpush1.msra.mxu0 0.0
    %209 = vmatprep.subr.mxu0 0.0
    %210 = vmatpush1.msra.mxu0 0.0
    %211 = vmatprep.subr.mxu0 0.0
    %212 = vmatpush1.msra.mxu0 0.0
    %213 = vmatprep.subr.mxu0 0.0
    %214 = vmatpush1.msra.mxu0 0.0
    %215 = vmatprep.subr.mxu0 0.0
    %216 = vmatpush1.msra.mxu0 0.0
    %217 = vmatprep.subr.mxu0 0.0
    %218 = vmatpush1.msra.mxu0 0.0
    %219 = vmatprep.subr.mxu0 0.0
    %220 = vmatpush1.msra.mxu0 0.0
    %221 = vmatprep.subr.mxu0 0.0
    %222 = vmatpush1.msra.mxu0 0.0
    %223 = vmatprep.subr.mxu0 0.0
    %224 = vmatpush1.msra.mxu0 0.0
    %225 = vmatprep.mubr.f32.mxu0 0.0
    %226 = vmatmul.mubr.f32.gmra.mrb[0].mxu0 %v159
    %v227 = vpop.f32.mrb[0].mxu0
    %v228 = vadd.f32 %v156, %v227
    %v229 = vpop.f32.mrb[0].mxu0
    %230 = vdwg.mxu0
    %vm231 = vcmp.ge.f32.partialorder %v228, 0.0
    %v232 = vmul.f32 %v228, 0.01
    %v233 = vsel %vm231, %v228, %v232
    %v234 = vld [vmem:[%s6] sm:$0xff]
    %v235 = vld [vmem:[%s6 + $0x8] sm:$0xff]
    %v236 = vld [vmem:[%s6 + $0x10] sm:$0xff]
    %v237 = vld [vmem:[%s6 + $0x18] sm:$0xff]
    %v238 = vld [vmem:[%s7] sm:$0x1]
    %v240 = vlaneseq
    %v241 = vshrl.u32 %v240, 7
    %v242 = vsub.s32 0, %v241
    %v243 = vrot.slane %v238, %v242
    %v246 = vsel %vm68, %v233, 0
    %248 = vmatprep.subr.mxu0 0.0
    %249 = vmatpush1.msra.mxu0 %v234
    %250 = vmatprep.subr.mxu0 0.0
    %251 = vmatpush1.msra.mxu0 %v235
    %252 = vmatprep.subr.mxu0 0.0
    %253 = vmatpush1.msra.mxu0 %v236
    %254 = vmatprep.subr.mxu0 0.0
    %255 = vmatpush1.msra.mxu0 %v237
    %256 = vmatprep.subr.mxu0 0.0
    %257 = vmatpush1.msra.mxu0 0.0
    %258 = vmatprep.subr.mxu0 0.0
    %259 = vmatpush1.msra.mxu0 0.0
    %260 = vmatprep.subr.mxu0 0.0
    %261 = vmatpush1.msra.mxu0 0.0
    %262 = vmatprep.subr.mxu0 0.0
    %263 = vmatpush1.msra.mxu0 0.0
    %264 = vmatprep.subr.mxu0 0.0
    %265 = vmatpush1.msra.mxu0 0.0
    %266 = vmatprep.subr.mxu0 0.0
    %267 = vmatpush1.msra.mxu0 0.0
    %268 = vmatprep.subr.mxu0 0.0
    %269 = vmatpush1.msra.mxu0 0.0
    %270 = vmatprep.subr.mxu0 0.0
    %271 = vmatpush1.msra.mxu0 0.0
    %272 = vmatprep.subr.mxu0 0.0
    %273 = vmatpush1.msra.mxu0 0.0
    %274 = vmatprep.subr.mxu0 0.0
    %275 = vmatpush1.msra.mxu0 0.0
    %276 = vmatprep.subr.mxu0 0.0
    %277 = vmatpush1.msra.mxu0 0.0
    %278 = vmatprep.subr.mxu0 0.0
    %279 = vmatpush1.msra.mxu0 0.0
    %280 = vmatprep.subr.mxu0 0.0
    %281 = vmatpush1.msra.mxu0 0.0
    %282 = vmatprep.subr.mxu0 0.0
    %283 = vmatpush1.msra.mxu0 0.0
    %284 = vmatprep.subr.mxu0 0.0
    %285 = vmatpush1.msra.mxu0 0.0
    %286 = vmatprep.subr.mxu0 0.0
    %287 = vmatpush1.msra.mxu0 0.0
    %288 = vmatprep.subr.mxu0 0.0
    %289 = vmatpush1.msra.mxu0 0.0
    %290 = vmatprep.subr.mxu0 0.0
    %291 = vmatpush1.msra.mxu0 0.0
    %292 = vmatprep.subr.mxu0 0.0
    %293 = vmatpush1.msra.mxu0 0.0
    %294 = vmatprep.subr.mxu0 0.0
    %295 = vmatpush1.msra.mxu0 0.0
    %296 = vmatprep.subr.mxu0 0.0
    %297 = vmatpush1.msra.mxu0 0.0
    %298 = vmatprep.subr.mxu0 0.0
    %299 = vmatpush1.msra.mxu0 0.0
    %300 = vmatprep.subr.mxu0 0.0
    %301 = vmatpush1.msra.mxu0 0.0
    %302 = vmatprep.subr.mxu0 0.0
    %303 = vmatpush1.msra.mxu0 0.0
    %304 = vmatprep.subr.mxu0 0.0
    %305 = vmatpush1.msra.mxu0 0.0
    %306 = vmatprep.subr.mxu0 0.0
    %307 = vmatpush1.msra.mxu0 0.0
    %308 = vmatprep.subr.mxu0 0.0
    %309 = vmatpush1.msra.mxu0 0.0
    %310 = vmatprep.subr.mxu0 0.0
    %311 = vmatpush1.msra.mxu0 0.0
    %312 = vmatprep.mubr.f32.mxu0 0.0
    %313 = vmatmul.mubr.f32.gmra.mrb[0].mxu0 %v246
    %v314 = vpop.f32.mrb[0].mxu0
    %v315 = vadd.f32 %v243, %v314
    %v316 = vpop.f32.mrb[0].mxu0
    %317 = vdwg.mxu0
    %vm318 = vcmp.ge.f32.partialorder %v315, 0.0
    %v319 = vmul.f32 %v315, 0.01
    %v320 = vsel %vm318, %v315, %v319
    %v321 = vld [vmem:[%s8] sm:$0xff]
    %v322 = vld [vmem:[%s8 + $0x8] sm:$0xff]
    %v323 = vld [vmem:[%s8 + $0x10] sm:$0xff]
    %v324 = vld [vmem:[%s8 + $0x18] sm:$0xff]
    %v325 = vld [vmem:[%s9] sm:$0x1]
    %v327 = vlaneseq
    %v328 = vshrl.u32 %v327, 7
    %v329 = vsub.s32 0, %v328
    %v330 = vrot.slane %v325, %v329
    %v333 = vsel %vm68, %v320, 0
    %335 = vmatprep.subr.mxu0 0.0
    %336 = vmatpush1.msra.mxu0 %v321
    %337 = vmatprep.subr.mxu0 0.0
    %338 = vmatpush1.msra.mxu0 %v322
    %339 = vmatprep.subr.mxu0 0.0
    %340 = vmatpush1.msra.mxu0 %v323
    %341 = vmatprep.subr.mxu0 0.0
    %342 = vmatpush1.msra.mxu0 %v324
    %343 = vmatprep.subr.mxu0 0.0
    %344 = vmatpush1.msra.mxu0 0.0
    %345 = vmatprep.subr.mxu0 0.0
    %346 = vmatpush1.msra.mxu0 0.0
    %347 = vmatprep.subr.mxu0 0.0
    %348 = vmatpush1.msra.mxu0 0.0
    %349 = vmatprep.subr.mxu0 0.0
    %350 = vmatpush1.msra.mxu0 0.0
    %351 = vmatprep.subr.mxu0 0.0
    %352 = vmatpush1.msra.mxu0 0.0
    %353 = vmatprep.subr.mxu0 0.0
    %354 = vmatpush1.msra.mxu0 0.0
    %355 = vmatprep.subr.mxu0 0.0
    %356 = vmatpush1.msra.mxu0 0.0
    %357 = vmatprep.subr.mxu0 0.0
    %358 = vmatpush1.msra.mxu0 0.0
    %359 = vmatprep.subr.mxu0 0.0
    %360 = vmatpush1.msra.mxu0 0.0
    %361 = vmatprep.subr.mxu0 0.0
    %362 = vmatpush1.msra.mxu0 0.0
    %363 = vmatprep.subr.mxu0 0.0
    %364 = vmatpush1.msra.mxu0 0.0
    %365 = vmatprep.subr.mxu0 0.0
    %366 = vmatpush1.msra.mxu0 0.0
    %367 = vmatprep.subr.mxu0 0.0
    %368 = vmatpush1.msra.mxu0 0.0
    %369 = vmatprep.subr.mxu0 0.0
    %370 = vmatpush1.msra.mxu0 0.0
    %371 = vmatprep.subr.mxu0 0.0
    %372 = vmatpush1.msra.mxu0 0.0
    %373 = vmatprep.subr.mxu0 0.0
    %374 = vmatpush1.msra.mxu0 0.0
    %375 = vmatprep.subr.mxu0 0.0
    %376 = vmatpush1.msra.mxu0 0.0
    %377 = vmatprep.subr.mxu0 0.0
    %378 = vmatpush1.msra.mxu0 0.0
    %379 = vmatprep.subr.mxu0 0.0
    %380 = vmatpush1.msra.mxu0 0.0
    %381 = vmatprep.subr.mxu0 0.0
    %382 = vmatpush1.msra.mxu0 0.0
    %383 = vmatprep.subr.mxu0 0.0
    %384 = vmatpush1.msra.mxu0 0.0
    %385 = vmatprep.subr.mxu0 0.0
    %386 = vmatpush1.msra.mxu0 0.0
    %387 = vmatprep.subr.mxu0 0.0
    %388 = vmatpush1.msra.mxu0 0.0
    %389 = vmatprep.subr.mxu0 0.0
    %390 = vmatpush1.msra.mxu0 0.0
    %391 = vmatprep.subr.mxu0 0.0
    %392 = vmatpush1.msra.mxu0 0.0
    %393 = vmatprep.subr.mxu0 0.0
    %394 = vmatpush1.msra.mxu0 0.0
    %395 = vmatprep.subr.mxu0 0.0
    %396 = vmatpush1.msra.mxu0 0.0
    %397 = vmatprep.subr.mxu0 0.0
    %398 = vmatpush1.msra.mxu0 0.0
    %399 = vmatprep.mubr.f32.mxu0 0.0
    %400 = vmatmul.mubr.f32.gmra.mrb[0].mxu0 %v333
    %v401 = vpop.f32.mrb[0].mxu0
    %v402 = vadd.f32 %v330, %v401
    %v403 = vpop.f32.mrb[0].mxu0
    %404 = vdwg.mxu0
    %vm405 = vcmp.ge.f32.partialorder %v402, 0.0
    %v406 = vmul.f32 %v402, 0.01
    %v407 = vsel %vm405, %v402, %v406
    %v408 = vld [vmem:[%s10] sm:$0xff]
    %v409 = vld [vmem:[%s10 + $0x8] sm:$0xff]
    %v410 = vld [vmem:[%s10 + $0x10] sm:$0xff]
    %v411 = vld [vmem:[%s10 + $0x18] sm:$0xff]
    %v412 = vld [vmem:[%s11] sm:$0x1]
    %v414 = vlaneseq
    %v415 = vshrl.u32 %v414, 7
    %v416 = vsub.s32 0, %v415
    %v417 = vrot.slane %v412, %v416
    %v420 = vsel %vm68, %v407, 0
    %422 = vmatprep.subr.mxu0 0.0
    %423 = vmatpush1.msra.mxu0 %v408
    %424 = vmatprep.subr.mxu0 0.0
    %425 = vmatpush1.msra.mxu0 %v409
    %426 = vmatprep.subr.mxu0 0.0
    %427 = vmatpush1.msra.mxu0 %v410
    %428 = vmatprep.subr.mxu0 0.0
    %429 = vmatpush1.msra.mxu0 %v411
    %430 = vmatprep.subr.mxu0 0.0
    %431 = vmatpush1.msra.mxu0 0.0
    %432 = vmatprep.subr.mxu0 0.0
    %433 = vmatpush1.msra.mxu0 0.0
    %434 = vmatprep.subr.mxu0 0.0
    %435 = vmatpush1.msra.mxu0 0.0
    %436 = vmatprep.subr.mxu0 0.0
    %437 = vmatpush1.msra.mxu0 0.0
    %438 = vmatprep.subr.mxu0 0.0
    %439 = vmatpush1.msra.mxu0 0.0
    %440 = vmatprep.subr.mxu0 0.0
    %441 = vmatpush1.msra.mxu0 0.0
    %442 = vmatprep.subr.mxu0 0.0
    %443 = vmatpush1.msra.mxu0 0.0
    %444 = vmatprep.subr.mxu0 0.0
    %445 = vmatpush1.msra.mxu0 0.0
    %446 = vmatprep.subr.mxu0 0.0
    %447 = vmatpush1.msra.mxu0 0.0
    %448 = vmatprep.subr.mxu0 0.0
    %449 = vmatpush1.msra.mxu0 0.0
    %450 = vmatprep.subr.mxu0 0.0
    %451 = vmatpush1.msra.mxu0 0.0
    %452 = vmatprep.subr.mxu0 0.0
    %453 = vmatpush1.msra.mxu0 0.0
    %454 = vmatprep.subr.mxu0 0.0
    %455 = vmatpush1.msra.mxu0 0.0
    %456 = vmatprep.subr.mxu0 0.0
    %457 = vmatpush1.msra.mxu0 0.0
    %458 = vmatprep.subr.mxu0 0.0
    %459 = vmatpush1.msra.mxu0 0.0
    %460 = vmatprep.subr.mxu0 0.0
    %461 = vmatpush1.msra.mxu0 0.0
    %462 = vmatprep.subr.mxu0 0.0
    %463 = vmatpush1.msra.mxu0 0.0
    %464 = vmatprep.subr.mxu0 0.0
    %465 = vmatpush1.msra.mxu0 0.0
    %466 = vmatprep.subr.mxu0 0.0
    %467 = vmatpush1.msra.mxu0 0.0
    %468 = vmatprep.subr.mxu0 0.0
    %469 = vmatpush1.msra.mxu0 0.0
    %470 = vmatprep.subr.mxu0 0.0
    %471 = vmatpush1.msra.mxu0 0.0
    %472 = vmatprep.subr.mxu0 0.0
    %473 = vmatpush1.msra.mxu0 0.0
    %474 = vmatprep.subr.mxu0 0.0
    %475 = vmatpush1.msra.mxu0 0.0
    %476 = vmatprep.subr.mxu0 0.0
    %477 = vmatpush1.msra.mxu0 0.0
    %478 = vmatprep.subr.mxu0 0.0
    %479 = vmatpush1.msra.mxu0 0.0
    %480 = vmatprep.subr.mxu0 0.0
    %481 = vmatpush1.msra.mxu0 0.0
    %482 = vmatprep.subr.mxu0 0.0
    %483 = vmatpush1.msra.mxu0 0.0
    %484 = vmatprep.subr.mxu0 0.0
    %485 = vmatpush1.msra.mxu0 0.0
    %486 = vmatprep.mubr.f32.mxu0 0.0
    %487 = vmatmul.mubr.f32.gmra.mrb[0].mxu0 %v420
    %v488 = vpop.f32.mrb[0].mxu0
    %v489 = vadd.f32 %v417, %v488
    %v490 = vpop.f32.mrb[0].mxu0
    %491 = vdwg.mxu0
    %v492 = vxor.u32 %v489, 2147483648
    %v493 = vmul.f32 %v492, 1.442695
    %v494 = vpow.pop %v493
    %v495 = vadd.f32 %v494, 1.0
    %v496 = vrcp.pop %v495
    %v497 = vmul.f32 1.0, %v496
    %499 = vrot.lane.b32.xlu0 %v497, 24
    %v500 = vpop.permute.xlu0 %499
    %vm502 = vcmask 392384
    %503 = vst.msk [vmem:[#allocation5] sm:$0xff] %vm502, %v500
    // Predicated region
    $region54: #{tpu_custom_call.1} parent=1 // pred_check
      _
    $region55: #{tpu_custom_call.1} parent=1 // pred_check_branch
      %505 = sbr.rel (0) target = $region57
    $region56: #{tpu_custom_call.1} parent=1 // pred_region
      %s507 = ssub.s32 128, 32
      %508 = vsyncadd [#allocation4], %s507
      %s509 = sshll.u32 [#allocation5], 4
      %s510 = int_to_ptr.vmem [resolvable:$true] %s509
      %515 = dma.vmem_to_hbm [thread:$0]  %s510, 32, %s12, [#allocation4], 32, 32, 2
    $region57: #{tpu_custom_call.1} parent=1 // pred_fallthru
      _
    // Predicated region
    $region58: #{tpu_custom_call.1} parent=1 // pred_check
      _
    $region59: #{tpu_custom_call.1} parent=1 // pred_check_branch
      %517 = sbr.rel (0) target = $region61
    $region60: #{tpu_custom_call.1} parent=1 // pred_region
      %518 = dma.done [#allocation4], 128
    $region61: #{tpu_custom_call.1} parent=1 // pred_fallthru
      _
    %519 = vsyncpa [#allocation3], 1
    %520 = vsyncpa [#allocation4], 1

</llo_original>
